<compile_context>
chip_gen: v5e
topology: v5e:2x2
jax: 0.10.0
libtpu: 0.0.40
codegen_flags: <defaults>
</compile_context>

<pallas_src>
import functools
import math

import jax
import jax.numpy as jnp
from jax import lax
from jax.experimental import pallas as pl
from jax.experimental.pallas import tpu as pltpu


def _round_up(x, m):
    return ((x + m - 1) // m) * m


def _vmem_capacity_bytes():
    """Per-core VMEM capacity; conservative fallback (v7x = 64 MiB/TC)."""
    try:
        info = pltpu.get_tpu_info()
        cap = getattr(info, "vmem_capacity_bytes", None)
        if cap:
            return int(cap)
    except Exception:
        pass
    return 64 << 20


def _fit_tiles(M, H, V, tm, tv, isz, osz, budget):
    """Pick (TM, TV) so kernel-2's VMEM footprint fits `budget` bytes."""
    TM = min(tm, _round_up(M, 8))
    TV = min(tv, _round_up(V, 128))
    while True:
        Mp = _round_up(M, TM)
        est = (2 * Mp * H * isz        # resident LN output (worst-case 2 buffers)
               + 2 * H * TV * isz      # decoder weight tiles (double-buffered)
               + 2 * TM * TV * osz     # output tiles (double-buffered)
               + 2 * TV * 4)           # vocab bias tiles
        if est <= budget:
            return TM, TV, Mp, est
        if TV > 512:
            TV = max(128, _round_up(TV // 2, 128))
        elif TM > 128:
            TM = max(8, _round_up(TM // 2, 8))
        else:
            return TM, TV, Mp, est


# ---------------------------------------------------------------------------
# Kernel 1: fused dense -> gelu (erf form) -> LayerNorm, tiled over M
# ---------------------------------------------------------------------------
def _dense_gelu_ln_kernel(x_ref, w_ref, b_ref, g_ref, beta_ref, o_ref, *,
                          eps, precision):
    h = jnp.dot(x_ref[...], w_ref[...],
                preferred_element_type=jnp.float32, precision=precision)
    h = h + b_ref[...].astype(jnp.float32)

    # gelu (exact erf form, matching pytorch_transformers.gelu)
    h = h * 0.5 * (1.0 + lax.erf(h * (1.0 / math.sqrt(2.0))))

    # BertLayerNorm over the last axis, statistics in f32.
    # (Zero-padded rows produce a finite constant-ish row; var>=0 and d==0 where
    #  var==0, so no NaN can reach the valid rows.)
    mu = jnp.mean(h, axis=-1, keepdims=True)
    d = h - mu
    var = jnp.mean(d * d, axis=-1, keepdims=True)
    hn = d * lax.rsqrt(var + eps)
    hn = hn * g_ref[...].astype(jnp.float32) + beta_ref[...].astype(jnp.float32)

    o_ref[...] = hn.astype(o_ref.dtype)


# ---------------------------------------------------------------------------
# Kernel 2: decoder projection + vocab bias.
#   Activation is a single resident (Mp, H) VMEM block; the M tile is sliced
#   in-kernel, so HBM sees the activation exactly once.
# ---------------------------------------------------------------------------
def _decoder_kernel(x_ref, w_ref, b_ref, o_ref, *, tm, precision):
    i = pl.program_id(1)
    row = pl.multiple_of(i * tm, tm)
    x = x_ref[pl.ds(row, tm), :]
    acc = jnp.dot(x, w_ref[...],
                  preferred_element_type=jnp.float32, precision=precision)
    o_ref[...] = (acc + b_ref[...].astype(jnp.float32)).astype(o_ref.dtype)


# ---------------------------------------------------------------------------
# One-time param prep (hoisted out of the per-call path).
# ---------------------------------------------------------------------------
def prepare_params(params, matmul_dtype=jnp.bfloat16):
    return {
        "dense_w": params["dense_w"].astype(matmul_dtype),          # (H, H) in,out
        "dense_b": params["dense_b"].astype(jnp.float32).reshape(1, -1),
        "ln_g": params["ln_g"].astype(jnp.float32).reshape(1, -1),
        "ln_b": params["ln_b"].astype(jnp.float32).reshape(1, -1),
        "dec_w": params["dec_w"].astype(matmul_dtype),               # (H, V) in,out
        "bias": params["bias"].astype(jnp.float32).reshape(1, -1),
    }


def roberta_lm_head(features, params, *, eps=1e-12, tm=512, tv=2048,
                    matmul_dtype=jnp.bfloat16, logits_dtype=jnp.bfloat16):
    """features: (B, S, H); params from prepare_params.  Returns (B, S, V)."""
    B, S, H = features.shape
    M = B * S
    V = params["dec_w"].shape[1]
    isz = jnp.dtype(matmul_dtype).itemsize
    osz = jnp.dtype(logits_dtype).itemsize

    cap = _vmem_capacity_bytes()
    budget = int(cap * 0.7)
    TM, TV, Mp, est2 = _fit_tiles(M, H, V, tm, tv, isz, osz, budget)
    nM = Mp // TM
    nV = pl.cdiv(V, TV)

    prec = (lax.Precision.HIGHEST
            if jnp.dtype(matmul_dtype) == jnp.dtype(jnp.float32) else None)

    # Per-call activation cast + (small) ragged-M pad.  Params are already in
    # matmul_dtype (astype below is a no-op XLA elides).
    x = features.reshape(M, H).astype(matmul_dtype)
    if Mp != M:
        x = jnp.pad(x, ((0, Mp - M), (0, 0)))
    w_dense = params["dense_w"].astype(matmul_dtype)
    w_dec = params["dec_w"].astype(matmul_dtype)
    b_dense = params["dense_b"]
    ln_g = params["ln_g"]
    ln_b = params["ln_b"]
    bias = params["bias"]

    # --- Kernel 1: dense + gelu + layernorm, tiled over M --------------------
    est1 = 2 * (TM * H + H * H + TM * H) * isz + 6 * H * 4
    ln_out = pl.pallas_call(
        functools.partial(_dense_gelu_ln_kernel, eps=eps, precision=prec),
        out_shape=jax.ShapeDtypeStruct((Mp, H), matmul_dtype),
        grid=(nM,),
        in_specs=[
            pl.BlockSpec((TM, H), lambda i: (i, 0)),     # x tile
            pl.BlockSpec((H, H), lambda i: (0, 0)),      # dense weight (resident)
            pl.BlockSpec((1, H), lambda i: (0, 0)),      # dense bias
            pl.BlockSpec((1, H), lambda i: (0, 0)),      # LN gamma
            pl.BlockSpec((1, H), lambda i: (0, 0)),      # LN beta
        ],
        out_specs=pl.BlockSpec((TM, H), lambda i: (i, 0)),
        compiler_params=pltpu.CompilerParams(
            dimension_semantics=("parallel",),
            vmem_limit_bytes=int(min(cap, max(est1 + (4 << 20), 16 << 20)))),
    )(x, w_dense, b_dense, ln_g, ln_b)

    # --- Kernel 2: decoder matmul + bias --------------------------------------
    # grid = (vocab OUTER parallel, M INNER arbitrary): the (H, TV) weight block
    # is resident over the inner axis and streamed from HBM exactly once; the
    # activation is a single resident VMEM block.
    cost = pl.CostEstimate(
        flops=2 * Mp * H * V,
        transcendentals=0,
        bytes_accessed=(Mp * H * isz       # activation read once
                        + H * V * isz      # decoder weight read once
                        + V * 4            # vocab bias
                        + M * V * osz),    # logits writeback
    )

    logits = pl.pallas_call(
        functools.partial(_decoder_kernel, tm=TM, precision=prec),
        out_shape=jax.ShapeDtypeStruct((M, V), logits_dtype),
        grid=(nV, nM),
        in_specs=[
            pl.BlockSpec((Mp, H), lambda j, i: (0, 0)),   # resident LN output
            pl.BlockSpec((H, TV), lambda j, i: (0, j)),   # decoder weight tile
            pl.BlockSpec((1, TV), lambda j, i: (0, j)),   # vocab bias tile
        ],
        out_specs=pl.BlockSpec((TM, TV), lambda j, i: (i, j)),
        compiler_params=pltpu.CompilerParams(
            dimension_semantics=("parallel", "arbitrary"),
            vmem_limit_bytes=int(min(cap, max(est2 + (4 << 20), 16 << 20)))),
        cost_estimate=cost,
    )(ln_out, w_dec, bias)

    return logits.reshape(B, S, V)


# ---------------------------------------------------------------------------
# Plain-JAX reference for verification (all f32)
# ---------------------------------------------------------------------------
def roberta_lm_head_ref(features, params, *, eps=1e-12):
    B, S, H = features.shape
    x = features.reshape(B * S, H).astype(jnp.float32)
    h = x @ params["dense_w"].astype(jnp.float32) + params["dense_b"].astype(jnp.float32)
    h = h * 0.5 * (1.0 + lax.erf(h / math.sqrt(2.0)))
    mu = jnp.mean(h, axis=-1, keepdims=True)
    var = jnp.mean((h - mu) ** 2, axis=-1, keepdims=True)
    h = (h - mu) / jnp.sqrt(var + eps)
    h = h * params["ln_g"].astype(jnp.float32) + params["ln_b"].astype(jnp.float32)
    out = h @ params["dec_w"].astype(jnp.float32) + params["bias"].astype(jnp.float32)
    V = params["dec_w"].shape[1]
    return out.reshape(B, S, V)


def _make_params(key, H, V):
    ks = jax.random.split(key, 4)
    return {
        # nn.Linear(H, H): weight stored transposed as (in,out), bias (H,)
        "dense_w": jax.random.normal(ks[0], (H, H), dtype=jnp.float32) * 0.02,
        "dense_b": jax.random.normal(ks[1], (H,), dtype=jnp.float32) * 0.01,
        # BertLayerNorm(H)
        "ln_g": jnp.ones((H,), dtype=jnp.float32),
        "ln_b": jnp.zeros((H,), dtype=jnp.float32),
        # nn.Linear(H, V, bias=False): stored as (in,out)
        "dec_w": jax.random.normal(ks[2], (H, V), dtype=jnp.float32) * 0.02,
        # separate self.bias parameter (zeros in the module; perturbed for testing)
        "bias": jax.random.normal(ks[3], (V,), dtype=jnp.float32) * 0.01,
    }


if __name__ == "__main__":
    eps = 1e-12
    key = jax.random.PRNGKey(0)
    k_feat, k_par, k_feat2, k_par2 = jax.random.split(key, 4)

    # ---- test 1: small config ------------------------------------------------
    B, S, H, V = 2, 8, 32, 256
    features = jax.random.normal(k_feat, (B, S, H), dtype=jnp.float32)
    params = _make_params(k_par, H, V)
    ref = roberta_lm_head_ref(features, params, eps=eps)

    # f32-operand / f32-logits path: exact check (precision=HIGHEST on the MXU)
    p_f32 = prepare_params(params, jnp.float32)
    out_f32 = jax.block_until_ready(
        roberta_lm_head(features, p_f32, eps=eps,
                        matmul_dtype=jnp.float32, logits_dtype=jnp.float32))
    assert out_f32.shape == (B, S, V)
    assert jnp.allclose(out_f32, ref, atol=1e-4, rtol=1e-4)

    # default fast path: bf16 operands, f32 accumulation, bf16 logits
    p_bf16 = prepare_params(params, jnp.bfloat16)
    out_bf16 = jax.block_until_ready(roberta_lm_head(features, p_bf16, eps=eps))
    assert out_bf16.shape == (B, S, V)
    assert out_bf16.dtype == jnp.bfloat16
    assert jnp.allclose(out_bf16.astype(jnp.float32), ref, atol=5e-2, rtol=5e-2)

    # ---- test 2: ragged shapes (exercise masked last M / vocab tiles) --------
    B2, S2, H2, V2 = 1, 5, 32, 200          # M=5 not mult of 8, V=200 not mult of 128
    features2 = jax.random.normal(k_feat2, (B2, S2, H2), dtype=jnp.float32)
    params2 = _make_params(k_par2, H2, V2)
    ref2 = roberta_lm_head_ref(features2, params2, eps=eps)
    p2 = prepare_params(params2, jnp.float32)
    out2 = jax.block_until_ready(
        roberta_lm_head(features2, p2, eps=eps,
                        matmul_dtype=jnp.float32, logits_dtype=jnp.float32))
    assert out2.shape == (B2, S2, V2)
    assert jnp.allclose(out2, ref2, atol=1e-4, rtol=1e-4)

    print("KERNEL_OK")
</pallas_src>

<mosaic_0001>
module attributes {stable_mosaic.version = 11 : i64} {
  func.func @_dense_gelu_ln_kernel(%arg0: i32, %arg1: memref<16x32xf32, #tpu.memory_space<vmem>>, %arg2: memref<32x32xf32, #tpu.memory_space<vmem>>, %arg3: memref<1x32xf32, #tpu.memory_space<vmem>>, %arg4: memref<1x32xf32, #tpu.memory_space<vmem>>, %arg5: memref<1x32xf32, #tpu.memory_space<vmem>>, %arg6: memref<16x32xf32, #tpu.memory_space<vmem>>) attributes {dimension_semantics = [#tpu.dimension_semantics<parallel>], iteration_bounds = array<i64: 1>, scalar_prefetch = 0 : i64, scratch_operands = 0 : i64, tpu.core_type = #tpu.core_type<tc>, window_params = [{transform_indices = @transform_0, window_bounds = array<i64: 16, 32>}, {pipeline_mode = #tpu.pipeline_mode<synchronous>, transform_indices = @transform_1, window_bounds = array<i64: 32, 32>}, {pipeline_mode = #tpu.pipeline_mode<synchronous>, transform_indices = @transform_2, window_bounds = array<i64: 1, 32>}, {pipeline_mode = #tpu.pipeline_mode<synchronous>, transform_indices = @transform_3, window_bounds = array<i64: 1, 32>}, {pipeline_mode = #tpu.pipeline_mode<synchronous>, transform_indices = @transform_4, window_bounds = array<i64: 1, 32>}, {transform_indices = @transform_5, window_bounds = array<i64: 16, 32>}]} {
    %c0 = arith.constant 0 : index
    %c0_0 = arith.constant 0 : index
    %0 = vector.load %arg1[%c0, %c0_0] : memref<16x32xf32, #tpu.memory_space<vmem>>, vector<16x32xf32>
    %c0_1 = arith.constant 0 : index
    %c0_2 = arith.constant 0 : index
    %1 = vector.load %arg2[%c0_1, %c0_2] : memref<32x32xf32, #tpu.memory_space<vmem>>, vector<32x32xf32>
    %cst = arith.constant dense<0.000000e+00> : vector<16x32xf32>
    %2 = tpu.matmul %0, %1, %cst {dimension_numbers = #tpu.dot_dimension_numbers<[1], [0], [0], [1], [0, 0, 1, 1], [], []>, precision = #tpu.contract_precision<fp32>} : vector<16x32xf32>, vector<32x32xf32>, vector<16x32xf32> -> vector<16x32xf32>
    %c0_3 = arith.constant 0 : index
    %c0_4 = arith.constant 0 : index
    %3 = vector.load %arg3[%c0_3, %c0_4] : memref<1x32xf32, #tpu.memory_space<vmem>>, vector<1x32xf32>
    %4 = vector.broadcast %3 : vector<1x32xf32> to vector<16x32xf32>
    %5 = arith.addf %2, %4 : vector<16x32xf32>
    %cst_5 = arith.constant 5.000000e-01 : f32
    %6 = vector.broadcast %cst_5 : f32 to vector<16x32xf32>
    %7 = arith.mulf %5, %6 : vector<16x32xf32>
    %cst_6 = arith.constant 0.707106769 : f32
    %8 = vector.broadcast %cst_6 : f32 to vector<16x32xf32>
    %9 = arith.mulf %5, %8 : vector<16x32xf32>
    %10 = math.erf %9 : vector<16x32xf32>
    %cst_7 = arith.constant 1.000000e+00 : f32
    %11 = vector.broadcast %cst_7 : f32 to vector<16x32xf32>
    %12 = arith.addf %11, %10 : vector<16x32xf32>
    %13 = arith.mulf %7, %12 : vector<16x32xf32>
    %cst_8 = arith.constant dense<0.000000e+00> : vector<16xf32>
    %14 = vector.multi_reduction <add>, %13, %cst_8 [1] : vector<16x32xf32> to vector<16xf32>
    %15 = vector.shape_cast %14 : vector<16xf32> to vector<16x1xf32>
    %cst_9 = arith.constant 3.200000e+01 : f32
    %16 = vector.broadcast %cst_9 : f32 to vector<16x1xf32>
    %17 = arith.divf %15, %16 : vector<16x1xf32>
    %18 = vector.broadcast %17 : vector<16x1xf32> to vector<16x32xf32>
    %19 = arith.subf %13, %18 : vector<16x32xf32>
    %20 = arith.mulf %19, %19 : vector<16x32xf32>
    %cst_10 = arith.constant dense<0.000000e+00> : vector<16xf32>
    %21 = vector.multi_reduction <add>, %20, %cst_10 [1] : vector<16x32xf32> to vector<16xf32>
    %22 = vector.shape_cast %21 : vector<16xf32> to vector<16x1xf32>
    %cst_11 = arith.constant 3.200000e+01 : f32
    %23 = vector.broadcast %cst_11 : f32 to vector<16x1xf32>
    %24 = arith.divf %22, %23 : vector<16x1xf32>
    %cst_12 = arith.constant 9.99999996E-13 : f32
    %25 = vector.broadcast %cst_12 : f32 to vector<16x1xf32>
    %26 = arith.addf %24, %25 : vector<16x1xf32>
    %27 = math.rsqrt %26 : vector<16x1xf32>
    %28 = vector.broadcast %27 : vector<16x1xf32> to vector<16x32xf32>
    %29 = arith.mulf %19, %28 : vector<16x32xf32>
    %c0_13 = arith.constant 0 : index
    %c0_14 = arith.constant 0 : index
    %30 = vector.load %arg4[%c0_13, %c0_14] : memref<1x32xf32, #tpu.memory_space<vmem>>, vector<1x32xf32>
    %31 = vector.broadcast %30 : vector<1x32xf32> to vector<16x32xf32>
    %32 = arith.mulf %29, %31 : vector<16x32xf32>
    %c0_15 = arith.constant 0 : index
    %c0_16 = arith.constant 0 : index
    %33 = vector.load %arg5[%c0_15, %c0_16] : memref<1x32xf32, #tpu.memory_space<vmem>>, vector<1x32xf32>
    %34 = vector.broadcast %33 : vector<1x32xf32> to vector<16x32xf32>
    %35 = arith.addf %32, %34 : vector<16x32xf32>
    %c0_17 = arith.constant 0 : index
    %c0_18 = arith.constant 0 : index
    %36 = vector.load %arg6[%c0_17, %c0_18] : memref<16x32xf32, #tpu.memory_space<vmem>>, vector<16x32xf32>
    tpu.vector_store %arg6[%c0_17, %c0_18], %35 {strides = array<i32>} : memref<16x32xf32, #tpu.memory_space<vmem>>, vector<16x32xf32>,
    return
  }
  func.func @transform_0(%arg0: i32) -> (i32, i32) {
    %c0_i32 = arith.constant 0 : i32
    %c0_i32_0 = arith.constant 0 : i32
    return %arg0, %c0_i32 : i32, i32
  }
  func.func @transform_1(%arg0: i32) -> (i32, i32) {
    %c0_i32 = arith.constant 0 : i32
    %c0_i32_0 = arith.constant 0 : i32
    %c0_i32_1 = arith.constant 0 : i32
    return %c0_i32, %c0_i32_0 : i32, i32
  }
  func.func @transform_2(%arg0: i32) -> (i32, i32) {
    %c0_i32 = arith.constant 0 : i32
    %c0_i32_0 = arith.constant 0 : i32
    %c0_i32_1 = arith.constant 0 : i32
    return %c0_i32, %c0_i32_0 : i32, i32
  }
  func.func @transform_3(%arg0: i32) -> (i32, i32) {
    %c0_i32 = arith.constant 0 : i32
    %c0_i32_0 = arith.constant 0 : i32
    %c0_i32_1 = arith.constant 0 : i32
    return %c0_i32, %c0_i32_0 : i32, i32
  }
  func.func @transform_4(%arg0: i32) -> (i32, i32) {
    %c0_i32 = arith.constant 0 : i32
    %c0_i32_0 = arith.constant 0 : i32
    %c0_i32_1 = arith.constant 0 : i32
    return %c0_i32, %c0_i32_0 : i32, i32
  }
  func.func @transform_5(%arg0: i32) -> (i32, i32) {
    %c0_i32 = arith.constant 0 : i32
    %c0_i32_0 = arith.constant 0 : i32
    return %arg0, %c0_i32 : i32, i32
  }
}

</mosaic_0001>

<llo_original>
// kernel: tpu_custom_call.1
$region0: #{tpu_custom_call.1}
  #allocation0 [shape = 'u32[]', space=smem, size = 0x4, offset = 0x4, fixed_abs, tag = 'smem constant byte address 0x4 - core index']
  #allocation1 [shape = 'u32[72,128]{1,0:T(1,128)}', space=vmem, size = 0x9000, scoped, tag = 'internal scratch']
  %s0 = inlined_call_operand.hbm [shape: f32[16,32], index: 0, kind: input, shape index: {}]
  %s1 = inlined_call_operand.hbm [shape: f32[32,32], index: 1, kind: input, shape index: {}]
  %s2 = inlined_call_operand.vmem [shape: f32[1,32], index: 2, kind: input, shape index: {}]
  %s3 = inlined_call_operand.vmem [shape: f32[1,32], index: 3, kind: input, shape index: {}]
  %s4 = inlined_call_operand.vmem [shape: f32[1,32], index: 4, kind: input, shape index: {}]
  %s5 = inlined_call_operand.hbm [shape: f32[16,32], index: 5, kind: output, shape index: {}]
  %s6 = sld [smem:[#allocation0]]
  $region38: #{tpu_custom_call.1} parent=0
    _
  %s8 = ssub.s32 1, %s6
  %s9 = scalar_select 0, %s8, %s6
  $region1: #{tpu_custom_call.1} parent=0
    #allocation2 [shape = 'u8[8192]{0}', space=vmem, size = 0x2000, scoped, tag = 'input window, operand 0, single buffered']
    #allocation3 [shape = 's32[1]{0}', space=sflag, size = 0x4, scoped, tag = 'scoped memory for tpu_custom_call.1']
    #allocation4 [shape = 's32[1]{0}', space=sflag, size = 0x4, scoped, tag = 'scoped memory for tpu_custom_call.1']
    #allocation5 [shape = 'u8[16384]{0}', space=vmem, size = 0x4000, scoped, tag = 'input window, operand 1, single buffered']
    #allocation6 [shape = 's32[1]{0}', space=sflag, size = 0x4, scoped, tag = 'scoped memory for tpu_custom_call.1']
    #allocation7 [shape = 'u8[8192]{0}', space=vmem, size = 0x2000, scoped, tag = 'output window, operand 0, single buffered']
    %10 = vsyncpa [#allocation3], 0
    %11 = vsyncpa [#allocation6], 0
    %12 = vsyncpa [#allocation4], 0
    // Predicated region
    $region2: #{tpu_custom_call.1} parent=1 // pred_check
      _
    $region3: #{tpu_custom_call.1} parent=1 // pred_check_branch
      %14 = sbr.rel (0) target = $region5
    $region4: #{tpu_custom_call.1} parent=1 // pred_region
      %16 = vsyncadd [#allocation3], 0
      %s17 = sshll.u32 %s0, 4
      %s18 = int_to_ptr.hbm [resolvable:$true] %s17
      %s19 = sshll.u32 [#allocation2], 4
      %s20 = int_to_ptr.vmem [resolvable:$true] %s19
      %25 = dma.hbm_to_vmem [thread:$0]  %s18, 256, %s20, [#allocation3], 128, 128, 8
    $region5: #{tpu_custom_call.1} parent=1 // pred_fallthru
      _
    // Predicated region
    $region6: #{tpu_custom_call.1} parent=1 // pred_check
      _
    $region7: #{tpu_custom_call.1} parent=1 // pred_check_branch
      %27 = sbr.rel (0) target = $region9
    $region8: #{tpu_custom_call.1} parent=1 // pred_region
      %29 = vsyncadd [#allocation6], 0
      %s30 = sshll.u32 %s1, 4
      %s31 = int_to_ptr.hbm [resolvable:$true] %s30
      %s32 = sshll.u32 [#allocation5], 4
      %s33 = int_to_ptr.vmem [resolvable:$true] %s32
      %38 = dma.hbm_to_vmem [thread:$0]  %s31, 512, %s33, [#allocation6], 128, 128, 8
    $region9: #{tpu_custom_call.1} parent=1 // pred_fallthru
      _
    // Predicated region
    $region10: #{tpu_custom_call.1} parent=1 // pred_check
      _
    $region11: #{tpu_custom_call.1} parent=1 // pred_check_branch
      %40 = sbr.rel (0) target = $region13
    $region12: #{tpu_custom_call.1} parent=1 // pred_region
      _
    $region13: #{tpu_custom_call.1} parent=1 // pred_fallthru
      _
    // Predicated region
    $region14: #{tpu_custom_call.1} parent=1 // pred_check
      _
    $region15: #{tpu_custom_call.1} parent=1 // pred_check_branch
      %42 = sbr.rel (0) target = $region17
    $region16: #{tpu_custom_call.1} parent=1 // pred_region
      _
    $region17: #{tpu_custom_call.1} parent=1 // pred_fallthru
      _
    // Predicated region
    $region18: #{tpu_custom_call.1} parent=1 // pred_check
      _
    $region19: #{tpu_custom_call.1} parent=1 // pred_check_branch
      %44 = sbr.rel (0) target = $region21
    $region20: #{tpu_custom_call.1} parent=1 // pred_region
      _
    $region21: #{tpu_custom_call.1} parent=1 // pred_fallthru
      _
    // Predicated region
    $region22: #{tpu_custom_call.1} parent=1 // pred_check
      _
    $region23: #{tpu_custom_call.1} parent=1 // pred_check_branch
      %46 = sbr.rel (0) target = $region25
    $region24: #{tpu_custom_call.1} parent=1 // pred_region
      %48 = dma.done [#allocation3], 256
    $region25: #{tpu_custom_call.1} parent=1 // pred_fallthru
      _
    // Predicated region
    $region26: #{tpu_custom_call.1} parent=1 // pred_check
      _
    $region27: #{tpu_custom_call.1} parent=1 // pred_check_branch
      %50 = sbr.rel (0) target = $region29
    $region28: #{tpu_custom_call.1} parent=1 // pred_region
      %52 = dma.done [#allocation6], 512
    $region29: #{tpu_custom_call.1} parent=1 // pred_fallthru
      _
    %v53 = vld [vmem:[#allocation2] sm:$0xff]
    %v54 = vld [vmem:[#allocation2 + $0x8] sm:$0xff]
    %v55 = vld [vmem:[#allocation5] sm:$0xff]
    %v56 = vld [vmem:[#allocation5 + $0x8] sm:$0xff]
    %v57 = vld [vmem:[#allocation5 + $0x10] sm:$0xff]
    %v58 = vld [vmem:[#allocation5 + $0x18] sm:$0xff]
    %v59 = vld [vmem:[%s2] sm:$0x1]
    %v61 = vperm.slane %v59, 0
    %vm63 = vcmask 261120
    %v65 = vsel %vm63, %v53, 0
    %v68 = vsel %vm63, %v54, 0
    %70 = vmatpush.msra.mxu0 0.0
    %71 = vmatpush.msra.mxu0 0.0
    %72 = vmatpush.msra.mxu0 0.0
    %73 = vmatpush.msra.mxu0 0.0
    %74 = vmatpush.msra.mxu0 0.0
    %75 = vmatpush.msra.mxu0 0.0
    %76 = vmatpush.msra.mxu0 0.0
    %77 = vmatpush.msra.mxu0 0.0
    %78 = vmatpush.msra.mxu0 0.0
    %79 = vmatpush.msra.mxu0 0.0
    %80 = vmatpush.msra.mxu0 0.0
    %81 = vmatpush.msra.mxu0 0.0
    %v82 = vand.u32 %v58, 4294901760
    %83 = vmatpush.msra.mxu0 %v82
    %v84 = vand.u32 %v57, 4294901760
    %85 = vmatpush.msra.mxu0 %v84
    %v86 = vand.u32 %v56, 4294901760
    %87 = vmatpush.msra.mxu0 %v86
    %v88 = vand.u32 %v55, 4294901760
    %89 = vmatpush.msra.mxu0 %v88
    %v90 = vand.u32 %v65, 4294901760
    %v91 = vsub.f32 %v65, %v90
    %v92 = vand.u32 %v91, 4294901760
    %v93 = vsub.f32 %v91, %v92
    %v94 = vand.u32 %v93, 4294901760
    %95 = vmatmul.f32.gmra.mxu0 %v94
    %v96 = vpop.f32.mrf.mxu0
    %v97 = vadd.f32 %v61, %v96
    %v98 = vand.u32 %v68, 4294901760
    %v99 = vsub.f32 %v68, %v98
    %v100 = vand.u32 %v99, 4294901760
    %v101 = vsub.f32 %v99, %v100
    %v102 = vand.u32 %v101, 4294901760
    %103 = vmatmul.f32.gmra.mxu0 %v102
    %v104 = vpop.f32.mrf.mxu0
    %v105 = vadd.f32 %v61, %v104
    %106 = vdwg.mxu0
    %107 = vmatpush.msra.mxu0 0.0
    %108 = vmatpush.msra.mxu0 0.0
    %109 = vmatpush.msra.mxu0 0.0
    %110 = vmatpush.msra.mxu0 0.0
    %111 = vmatpush.msra.mxu0 0.0
    %112 = vmatpush.msra.mxu0 0.0
    %113 = vmatpush.msra.mxu0 0.0
    %114 = vmatpush.msra.mxu0 0.0
    %115 = vmatpush.msra.mxu0 0.0
    %116 = vmatpush.msra.mxu0 0.0
    %117 = vmatpush.msra.mxu0 0.0
    %118 = vmatpush.msra.mxu0 0.0
    %v119 = vand.u32 %v58, 4294901760
    %v120 = vsub.f32 %v58, %v119
    %v121 = vand.u32 %v120, 4294901760
    %v122 = vsub.f32 %v120, %v121
    %v123 = vand.u32 %v122, 4294901760
    %124 = vmatpush.msra.mxu0 %v123
    %v125 = vand.u32 %v57, 4294901760
    %v126 = vsub.f32 %v57, %v125
    %v127 = vand.u32 %v126, 4294901760
    %v128 = vsub.f32 %v126, %v127
    %v129 = vand.u32 %v128, 4294901760
    %130 = vmatpush.msra.mxu0 %v129
    %v131 = vand.u32 %v56, 4294901760
    %v132 = vsub.f32 %v56, %v131
    %v133 = vand.u32 %v132, 4294901760
    %v134 = vsub.f32 %v132, %v133
    %v135 = vand.u32 %v134, 4294901760
    %136 = vmatpush.msra.mxu0 %v135
    %v137 = vand.u32 %v55, 4294901760
    %v138 = vsub.f32 %v55, %v137
    %v139 = vand.u32 %v138, 4294901760
    %v140 = vsub.f32 %v138, %v139
    %v141 = vand.u32 %v140, 4294901760
    %142 = vmatpush.msra.mxu0 %v141
    %v143 = vand.u32 %v65, 4294901760
    %144 = vmatmul.f32.gmra.mxu0 %v143
    %v145 = vpop.f32.mrf.mxu0
    %v146 = vadd.f32 %v97, %v145
    %v147 = vand.u32 %v68, 4294901760
    %148 = vmatmul.f32.gmra.mxu0 %v147
    %v149 = vpop.f32.mrf.mxu0
    %v150 = vadd.f32 %v105, %v149
    %151 = vdwg.mxu0
    %152 = vmatpush.msra.mxu0 0.0
    %153 = vmatpush.msra.mxu0 0.0
    %154 = vmatpush.msra.mxu0 0.0
    %155 = vmatpush.msra.mxu0 0.0
    %156 = vmatpush.msra.mxu0 0.0
    %157 = vmatpush.msra.mxu0 0.0
    %158 = vmatpush.msra.mxu0 0.0
    %159 = vmatpush.msra.mxu0 0.0
    %160 = vmatpush.msra.mxu0 0.0
    %161 = vmatpush.msra.mxu0 0.0
    %162 = vmatpush.msra.mxu0 0.0
    %163 = vmatpush.msra.mxu0 0.0
    %v164 = vand.u32 %v58, 4294901760
    %v165 = vsub.f32 %v58, %v164
    %166 = vmatpush.msra.mxu0 %v165
    %v167 = vand.u32 %v57, 4294901760
    %v168 = vsub.f32 %v57, %v167
    %169 = vmatpush.msra.mxu0 %v168
    %v170 = vand.u32 %v56, 4294901760
    %v171 = vsub.f32 %v56, %v170
    %172 = vmatpush.msra.mxu0 %v171
    %v173 = vand.u32 %v55, 4294901760
    %v174 = vsub.f32 %v55, %v173
    %175 = vmatpush.msra.mxu0 %v174
    %v176 = vand.u32 %v65, 4294901760
    %v177 = vsub.f32 %v65, %v176
    %178 = vmatmul.f32.gmra.mxu0 %v177
    %v179 = vpop.f32.mrf.mxu0
    %v180 = vadd.f32 %v146, %v179
    %v181 = vand.u32 %v68, 4294901760
    %v182 = vsub.f32 %v68, %v181
    %183 = vmatmul.f32.gmra.mxu0 %v182
    %v184 = vpop.f32.mrf.mxu0
    %v185 = vadd.f32 %v150, %v184
    %186 = vdwg.mxu0
    %187 = vmatpush.msra.mxu0 0.0
    %188 = vmatpush.msra.mxu0 0.0
    %189 = vmatpush.msra.mxu0 0.0
    %190 = vmatpush.msra.mxu0 0.0
    %191 = vmatpush.msra.mxu0 0.0
    %192 = vmatpush.msra.mxu0 0.0
    %193 = vmatpush.msra.mxu0 0.0
    %194 = vmatpush.msra.mxu0 0.0
    %195 = vmatpush.msra.mxu0 0.0
    %196 = vmatpush.msra.mxu0 0.0
    %197 = vmatpush.msra.mxu0 0.0
    %198 = vmatpush.msra.mxu0 0.0
    %v199 = vand.u32 %v58, 4294901760
    %200 = vmatpush.msra.mxu0 %v199
    %v201 = vand.u32 %v57, 4294901760
    %202 = vmatpush.msra.mxu0 %v201
    %v203 = vand.u32 %v56, 4294901760
    %204 = vmatpush.msra.mxu0 %v203
    %v205 = vand.u32 %v55, 4294901760
    %206 = vmatpush.msra.mxu0 %v205
    %v207 = vand.u32 %v65, 4294901760
    %v208 = vsub.f32 %v65, %v207
    %v209 = vand.u32 %v208, 4294901760
    %210 = vmatmul.f32.gmra.mxu0 %v209
    %v211 = vpop.f32.mrf.mxu0
    %v212 = vadd.f32 %v180, %v211
    %v213 = vand.u32 %v68, 4294901760
    %v214 = vsub.f32 %v68, %v213
    %v215 = vand.u32 %v214, 4294901760
    %216 = vmatmul.f32.gmra.mxu0 %v215
    %v217 = vpop.f32.mrf.mxu0
    %v218 = vadd.f32 %v185, %v217
    %219 = vdwg.mxu0
    %220 = vmatpush.msra.mxu0 0.0
    %221 = vmatpush.msra.mxu0 0.0
    %222 = vmatpush.msra.mxu0 0.0
    %223 = vmatpush.msra.mxu0 0.0
    %224 = vmatpush.msra.mxu0 0.0
    %225 = vmatpush.msra.mxu0 0.0
    %226 = vmatpush.msra.mxu0 0.0
    %227 = vmatpush.msra.mxu0 0.0
    %228 = vmatpush.msra.mxu0 0.0
    %229 = vmatpush.msra.mxu0 0.0
    %230 = vmatpush.msra.mxu0 0.0
    %231 = vmatpush.msra.mxu0 0.0
    %v232 = vand.u32 %v58, 4294901760
    %v233 = vsub.f32 %v58, %v232
    %v234 = vand.u32 %v233, 4294901760
    %235 = vmatpush.msra.mxu0 %v234
    %v236 = vand.u32 %v57, 4294901760
    %v237 = vsub.f32 %v57, %v236
    %v238 = vand.u32 %v237, 4294901760
    %239 = vmatpush.msra.mxu0 %v238
    %v240 = vand.u32 %v56, 4294901760
    %v241 = vsub.f32 %v56, %v240
    %v242 = vand.u32 %v241, 4294901760
    %243 = vmatpush.msra.mxu0 %v242
    %v244 = vand.u32 %v55, 4294901760
    %v245 = vsub.f32 %v55, %v244
    %v246 = vand.u32 %v245, 4294901760
    %247 = vmatpush.msra.mxu0 %v246
    %v248 = vand.u32 %v65, 4294901760
    %249 = vmatmul.f32.gmra.mxu0 %v248
    %v250 = vpop.f32.mrf.mxu0
    %v251 = vadd.f32 %v212, %v250
    %v252 = vand.u32 %v68, 4294901760
    %253 = vmatmul.f32.gmra.mxu0 %v252
    %v254 = vpop.f32.mrf.mxu0
    %v255 = vadd.f32 %v218, %v254
    %256 = vdwg.mxu0
    %257 = vmatpush.msra.mxu0 0.0
    %258 = vmatpush.msra.mxu0 0.0
    %259 = vmatpush.msra.mxu0 0.0
    %260 = vmatpush.msra.mxu0 0.0
    %261 = vmatpush.msra.mxu0 0.0
    %262 = vmatpush.msra.mxu0 0.0
    %263 = vmatpush.msra.mxu0 0.0
    %264 = vmatpush.msra.mxu0 0.0
    %265 = vmatpush.msra.mxu0 0.0
    %266 = vmatpush.msra.mxu0 0.0
    %267 = vmatpush.msra.mxu0 0.0
    %268 = vmatpush.msra.mxu0 0.0
    %v269 = vand.u32 %v58, 4294901760
    %270 = vmatpush.msra.mxu0 %v269
    %v271 = vand.u32 %v57, 4294901760
    %272 = vmatpush.msra.mxu0 %v271
    %v273 = vand.u32 %v56, 4294901760
    %274 = vmatpush.msra.mxu0 %v273
    %v275 = vand.u32 %v55, 4294901760
    %276 = vmatpush.msra.mxu0 %v275
    %v277 = vand.u32 %v65, 4294901760
    %278 = vmatmul.f32.gmra.mxu0 %v277
    %v279 = vpop.f32.mrf.mxu0
    %v280 = vadd.f32 %v251, %v279
    %v281 = vand.u32 %v68, 4294901760
    %282 = vmatmul.f32.gmra.mxu0 %v281
    %v283 = vpop.f32.mrf.mxu0
    %v284 = vadd.f32 %v255, %v283
    %285 = vdwg.mxu0
    %v286 = vmul.f32 %v280, 0.5
    %v287 = vmul.f32 %v284, 0.5
    %v288 = vmul.f32 %v280, 0.70710677
    %v289 = vmul.f32 %v284, 0.70710677
    %v290 = vmul.f32 %v288, %v288
    %v291 = vmin.f32 16.0, %v290
    %v292 = vmul.f32 %v291, 2.1237322e-06
    %v293 = vadd.f32 %v292, 0.00028619796
    %v294 = vmul.f32 %v291, %v293
    %v295 = vadd.f32 %v294, 0.0036580483
    %v296 = vmul.f32 %v291, %v295
    %v297 = vadd.f32 %v296, 0.05243302
    %v298 = vmul.f32 %v291, %v297
    %v299 = vadd.f32 %v298, 0.18741608
    %v300 = vmul.f32 %v291, %v299
    %v301 = vadd.f32 %v300, 1.1283791
    %v302 = vmul.f32 %v288, %v301
    %v303 = vmul.f32 %v291, 3.8918573e-05
    %v304 = vadd.f32 %v303, 0.001143296
    %v305 = vmul.f32 %v291, %v304
    %v306 = vadd.f32 %v305, 0.014752088
    %v307 = vmul.f32 %v291, %v306
    %v308 = vadd.f32 %v307, 0.112945676
    %v309 = vmul.f32 %v291, %v308
    %v310 = vadd.f32 %v309, 0.4994258
    %v311 = vmul.f32 %v291, %v310
    %v312 = vadd.f32 %v311, 1.0
    %v313 = vrcp.pop %v312
    %v314 = vmul.f32 %v312, %v313
    %v315 = vsub.f32 1.0, %v314
    %v316 = vmul.f32 %v313, %v315
    %v317 = vadd.f32 %v313, %v316
    %vm318 = vweird.f32 %v312
    %vm319 = vweird.f32 %v313
    %vm320 = vmor %vm318, %vm319
    %v321 = vsel %vm320, %v313, %v317
    %v322 = vand.u32 2147483647, %v312
    %vm323 = vcmp.eq.f32.partialorder %v322, 8.507059e+37
    %v324 = vand.u32 %v312, 2147483648
    %v325 = vor.u32 1.1754944e-38, %v324
    %v326 = vsel %vm323, %v325, %v321
    %v327 = vmul.f32 %v302, %v326
    %v328 = vmin.f32 %v327, 1.0
    %v329 = vmax.f32 %v328, -1.0
    %v330 = vmul.f32 %v289, %v289
    %v331 = vmin.f32 16.0, %v330
    %v332 = vmul.f32 %v331, 2.1237322e-06
    %v333 = vadd.f32 %v332, 0.00028619796
    %v334 = vmul.f32 %v331, %v333
    %v335 = vadd.f32 %v334, 0.0036580483
    %v336 = vmul.f32 %v331, %v335
    %v337 = vadd.f32 %v336, 0.05243302
    %v338 = vmul.f32 %v331, %v337
    %v339 = vadd.f32 %v338, 0.18741608
    %v340 = vmul.f32 %v331, %v339
    %v341 = vadd.f32 %v340, 1.1283791
    %v342 = vmul.f32 %v289, %v341
    %v343 = vmul.f32 %v331, 3.8918573e-05
    %v344 = vadd.f32 %v343, 0.001143296
    %v345 = vmul.f32 %v331, %v344
    %v346 = vadd.f32 %v345, 0.014752088
    %v347 = vmul.f32 %v331, %v346
    %v348 = vadd.f32 %v347, 0.112945676
    %v349 = vmul.f32 %v331, %v348
    %v350 = vadd.f32 %v349, 0.4994258
    %v351 = vmul.f32 %v331, %v350
    %v352 = vadd.f32 %v351, 1.0
    %v353 = vrcp.pop %v352
    %v354 = vmul.f32 %v352, %v353
    %v355 = vsub.f32 1.0, %v354
    %v356 = vmul.f32 %v353, %v355
    %v357 = vadd.f32 %v353, %v356
    %vm358 = vweird.f32 %v352
    %vm359 = vweird.f32 %v353
    %vm360 = vmor %vm358, %vm359
    %v361 = vsel %vm360, %v353, %v357
    %v362 = vand.u32 2147483647, %v352
    %vm363 = vcmp.eq.f32.partialorder %v362, 8.507059e+37
    %v364 = vand.u32 %v352, 2147483648
    %v365 = vor.u32 1.1754944e-38, %v364
    %v366 = vsel %vm363, %v365, %v361
    %v367 = vmul.f32 %v342, %v366
    %v368 = vmin.f32 %v367, 1.0
    %v369 = vmax.f32 %v368, -1.0
    %v370 = vadd.f32 %v329, 1.0
    %v371 = vadd.f32 %v369, 1.0
    %v372 = vmul.f32 %v286, %v370
    %v373 = vmul.f32 %v287, %v371
    %v374 = vsel %vm63, %v372, 0.0
    %375 = vadd.xlane.f32.xlu0 %v374
    %v376 = vpop.xlane.xlu0 %375
    %v377 = vsel %vm63, %v373, 0.0
    %378 = vadd.xlane.f32.xlu0 %v377
    %v379 = vpop.xlane.xlu0 %378
    %v380 = vrcp.pop 32.0
    %v381 = vmul.f32 32.0, %v380
    %v382 = vsub.f32 1.0, %v381
    %v383 = vmul.f32 %v380, %v382
    %v384 = vadd.f32 %v380, %v383
    %vm385 = vweird.f32 %v380
    %v386 = vsel %vm385, %v380, %v384
    %v387 = vmul.f32 %v376, %v386
    %v388 = vmul.f32 %v379, %v386
    %v389 = vsub.f32 %v372, %v387
    %v390 = vsub.f32 %v373, %v388
    %v391 = vmul.f32 %v389, %v389
    %v392 = vmul.f32 %v390, %v390
    %v393 = vsel %vm63, %v391, 0.0
    %394 = vadd.xlane.f32.xlu0 %v393
    %v395 = vpop.xlane.xlu0 %394
    %v396 = vsel %vm63, %v392, 0.0
    %397 = vadd.xlane.f32.xlu0 %v396
    %v398 = vpop.xlane.xlu0 %397
    %v399 = vmul.f32 %v395, %v386
    %v400 = vmul.f32 %v398, %v386
    %v401 = vadd.f32 %v399, 1e-12
    %v402 = vadd.f32 %v400, 1e-12
    %v403 = vrsqrt.pop %v401
    %v404 = vmul.f32 %v403, %v401
    %v405 = vmul.f32 %v404, %v403
    %v406 = vmul.f32 0.5, %v405
    %v407 = vsub.f32 1.5, %v406
    %v408 = vmul.f32 %v403, %v407
    %vm409 = vweird.f32 %v401
    %vm410 = vweird.f32 %v403
    %vm411 = vmor %vm409, %vm410
    %v412 = vsel %vm411, %v403, %v408
    %v413 = vrsqrt.pop %v402
    %v414 = vmul.f32 %v413, %v402
    %v415 = vmul.f32 %v414, %v413
    %v416 = vmul.f32 0.5, %v415
    %v417 = vsub.f32 1.5, %v416
    %v418 = vmul.f32 %v413, %v417
    %vm419 = vweird.f32 %v402
    %vm420 = vweird.f32 %v413
    %vm421 = vmor %vm419, %vm420
    %v422 = vsel %vm421, %v413, %v418
    %v423 = vmul.f32 %v389, %v412
    %v424 = vmul.f32 %v390, %v422
    %v425 = vld [vmem:[%s3] sm:$0x1]
    %v427 = vperm.slane %v425, 0
    %v429 = vmul.f32 %v423, %v427
    %v430 = vmul.f32 %v424, %v427
    %v431 = vld [vmem:[%s4] sm:$0x1]
    %v433 = vperm.slane %v431, 0
    %v435 = vadd.f32 %v429, %v433
    %v436 = vadd.f32 %v430, %v433
    %437 = vst.msk [vmem:[#allocation7] sm:$0xff] %vm63, %v435
    %438 = vst.msk [vmem:[#allocation7 + $0x8] sm:$0xff] %vm63, %v436
    // Predicated region
    $region30: #{tpu_custom_call.1} parent=1 // pred_check
      _
    $region31: #{tpu_custom_call.1} parent=1 // pred_check_branch
      %440 = sbr.rel (0) target = $region33
    $region32: #{tpu_custom_call.1} parent=1 // pred_region
      %442 = vsyncadd [#allocation4], 0
      %s443 = sshll.u32 [#allocation7], 4
      %s444 = int_to_ptr.vmem [resolvable:$true] %s443
      %s445 = sshll.u32 %s5, 4
      %s446 = int_to_ptr.hbm [resolvable:$true] %s445
      %451 = dma.vmem_to_hbm [thread:$0]  %s444, 256, %s446, [#allocation4], 128, 128, 8
    $region33: #{tpu_custom_call.1} parent=1 // pred_fallthru
      _
    // Predicated region
    $region34: #{tpu_custom_call.1} parent=1 // pred_check
      _
    $region35: #{tpu_custom_call.1} parent=1 // pred_check_branch
      %453 = sbr.rel (0) target = $region37
    $region36: #{tpu_custom_call.1} parent=1 // pred_region
      %455 = dma.done [#allocation4], 256
    $region37: #{tpu_custom_call.1} parent=1 // pred_fallthru
      _
    %456 = vsyncpa [#allocation3], 1
    %457 = vsyncpa [#allocation6], 1
    %458 = vsyncpa [#allocation4], 1

</llo_original>
